<compile_context>
chip_gen: v7x
topology: tpu7x:2x2x1
jax: 0.10.0
libtpu: 0.0.40
codegen_flags: <defaults>
</compile_context>

<pallas_src>
import math
import functools

import jax
import jax.numpy as jnp
from jax.experimental import pallas as pl
from jax.experimental.pallas import tpu as pltpu


# ---------------------------------------------------------------------------
# Kernel 1: fused QKV projection + RoPE + logn*scale   (grid: bsz x q_tiles)
# ---------------------------------------------------------------------------
def _qkv_rope_kernel(hs_ref, wq_ref, wk_ref, wv_ref, cos_ref, sin_ref, logn_ref,
                     q_ref, k_ref, v_ref, *, num_heads, num_kv_heads, head_dim):
    x = hs_ref[0]                                               # (TQ, H) bf16
    q = jnp.dot(x, wq_ref[...], preferred_element_type=jnp.float32)   # (TQ, nh*hd)
    k = jnp.dot(x, wk_ref[...], preferred_element_type=jnp.float32)   # (TQ, nkv*hd)
    v = jnp.dot(x, wv_ref[...], preferred_element_type=jnp.float32)   # (TQ, nkv*hd)

    cos = cos_ref[0]                                            # (TQ, hd) f32
    sin = sin_ref[0]                                            # (TQ, hd) f32, sign-baked
    logn_scale = logn_ref[...]                                  # (TQ, 1) = logn / sqrt(hd)
    half = head_dim // 2

    def rope(t):                                                # t: (TQ, hd) f32
        # rotate_half(t)*sin == roll(t, hd/2)*sin_signed  (sign baked in wrapper)
        return t * cos + pltpu.roll(t, shift=half, axis=1) * sin

    for h in range(num_heads):
        lo = h * head_dim
        q_ref[0, :, pl.ds(lo, head_dim)] = (
            rope(q[:, lo:lo + head_dim]) * logn_scale).astype(q_ref.dtype)
    for h in range(num_kv_heads):                               # K RoPE once per KV head
        lo = h * head_dim
        k_ref[0, :, pl.ds(lo, head_dim)] = rope(
            k[:, lo:lo + head_dim]).astype(k_ref.dtype)
    v_ref[0] = v.astype(v_ref.dtype)


# ---------------------------------------------------------------------------
# Kernel 2: flash attention   (grid: bsz x nh x q_tiles x kv_tiles)
# ---------------------------------------------------------------------------
def _flash_attn_kernel(q_ref, k_ref, v_ref, o_ref, m_sc, l_sc, acc_sc,
                       *, q_tile, kv_tile):
    i = pl.program_id(2)
    j = pl.program_id(3)

    @pl.when(j == 0)
    def _():
        m_sc[...] = jnp.full_like(m_sc, -jnp.inf)
        l_sc[...] = jnp.zeros_like(l_sc)
        acc_sc[...] = jnp.zeros_like(acc_sc)

    # Skip KV tiles that lie entirely above the causal diagonal.
    @pl.when(j * kv_tile <= i * q_tile + (q_tile - 1))
    def _():
        q = q_ref[0]                                            # (TQ, hd) bf16, pre-scaled
        k = k_ref[0]                                            # (TK, hd) bf16
        s = jax.lax.dot_general(q, k, (((1,), (1,)), ((), ())),
                                preferred_element_type=jnp.float32)    # (TQ, TK) f32
        # In-kernel causal mask from absolute positions (no (S,S) mask DMA).
        row = i * q_tile + jax.lax.broadcasted_iota(jnp.int32, (q_tile, kv_tile), 0)
        col = j * kv_tile + jax.lax.broadcasted_iota(jnp.int32, (q_tile, kv_tile), 1)
        s = jnp.where(col <= row, s, -jnp.inf)

        m_prev = m_sc[...]
        m_new = jnp.maximum(m_prev, jnp.max(s, axis=-1, keepdims=True))
        alpha = jnp.exp(m_prev - m_new)
        p = jnp.exp(s - m_new)                                  # unnormalized probs
        l_sc[...] = alpha * l_sc[...] + jnp.sum(p, axis=-1, keepdims=True)
        acc_sc[...] = alpha * acc_sc[...] + jnp.dot(
            p.astype(v_ref.dtype), v_ref[0], preferred_element_type=jnp.float32)
        m_sc[...] = m_new

    @pl.when(j == pl.num_programs(3) - 1)
    def _():
        # Deferred softmax normalization: one (TQ,1) approx reciprocal on the EUP.
        inv_l = pl.reciprocal(l_sc[...], approx=True)
        o_ref[0] = (acc_sc[...] * inv_l).astype(o_ref.dtype)


# ---------------------------------------------------------------------------
# Kernel 3: output projection   (grid: bsz x q_tiles)
# ---------------------------------------------------------------------------
def _o_proj_kernel(attn_ref, wo_ref, out_ref):
    out_ref[0] = jnp.dot(attn_ref[0], wo_ref[...],
                         preferred_element_type=jnp.float32).astype(out_ref.dtype)


def _pick_tile(n, preferred):
    """Largest tile <= preferred that tiles n (multiple of 8), else full n."""
    if n <= preferred:
        return n
    for t in range(preferred, 7, -1):
        if n % t == 0 and t % 8 == 0:
            return t
    return n


def llama_attention_enhance_long(hidden_states, attention_mask, position_ids,
                                 params, config, training=False,
                                 q_tile=256, kv_tile=256):
    """Pallas implementation of LlamaAttentionEnhanceLong.forward (no KV cache).

    Returns attn_output (the torch module returns (attn_output, None, past_kv)).
    The additive `attention_mask` is assumed to be the standard causal mask
    (the module has is_causal=True); it is regenerated in-kernel from positions
    instead of DMAing the dense (S, S) tensor.
    """
    # TODO(synk): arbitrary (non-causal / padding) additive attention masks are
    # not consumed by the fused kernel; pass per-row KV lengths via scalar
    # prefetch if padding support is needed.
    del attention_mask

    bsz, q_len, hidden = hidden_states.shape
    num_heads = config["num_attention_heads"]
    num_kv_heads = config["num_key_value_heads"]
    head_dim = hidden // num_heads
    groups = num_heads // num_kv_heads
    max_pos = config["max_position_embeddings"]
    rope_theta = config["rope_theta"]
    max_length = config["max_length"]
    scaling_factor = 2.0            # 'dynamic_ntk_rope' path hard-codes factor=2

    kv_seq_len = q_len              # no past_key_value

    TQ = _pick_tile(q_len, q_tile)
    TK = _pick_tile(q_len, kv_tile)
    nq_tiles = q_len // TQ
    nk_tiles = q_len // TK

    # ---- LlamaDynamicNTKScalingRotaryEmbedding tables (glue) ----
    if kv_seq_len > max_pos:
        base = rope_theta * ((scaling_factor * kv_seq_len / max_pos)
                             - (scaling_factor - 1.0)) ** (head_dim / (head_dim - 2))
    else:
        base = rope_theta
    inv_freq = 1.0 / (base ** (jnp.arange(0, head_dim, 2, dtype=jnp.float32) / head_dim))
    t = jnp.arange(kv_seq_len, dtype=jnp.float32)
    freqs = jnp.outer(t, inv_freq)                              # (kv, hd/2)
    emb = jnp.concatenate([freqs, freqs], axis=-1)              # (kv, hd)
    cos = jnp.cos(emb)[position_ids].astype(jnp.float32)        # (bsz, q_len, hd)
    # Bake the rotate_half sign into sin: rotate_half(x)*sin == roll(x,hd/2)*sin_signed.
    sign = jnp.concatenate([-jnp.ones(head_dim // 2, jnp.float32),
                            jnp.ones(head_dim // 2, jnp.float32)])
    sin = (jnp.sin(emb)[position_ids] * sign).astype(jnp.float32)

    # ---- logn attention scaling, with 1/sqrt(head_dim) folded in (glue) ----
    seq_start = kv_seq_len - q_len
    pos1 = jnp.arange(seq_start + 1, kv_seq_len + 1, dtype=jnp.float32)   # 1-based
    if training:
        logn = jnp.log(pos1) / math.log(max_length)             # logn_tensor_train
    else:
        logn = jnp.where(pos1 > max_length,
                         jnp.log(pos1) / math.log(max_length), 1.0)
    logn_scale = (logn / math.sqrt(head_dim)).reshape(q_len, 1).astype(jnp.float32)

    # bf16 MXU operands (accumulation stays f32 inside the kernels).
    x = hidden_states.astype(jnp.bfloat16)
    wq = params["wq"].astype(jnp.bfloat16)
    wk = params["wk"].astype(jnp.bfloat16)
    wv = params["wv"].astype(jnp.bfloat16)
    wo = params["wo"].astype(jnp.bfloat16)

    nh_hd = num_heads * head_dim
    nkv_hd = num_kv_heads * head_dim

    # ---- Kernel 1: fused QKV projection + RoPE + logn*scale ----
    qkv_kernel = functools.partial(_qkv_rope_kernel, num_heads=num_heads,
                                   num_kv_heads=num_kv_heads, head_dim=head_dim)
    q, k, v = pl.pallas_call(
        qkv_kernel,
        out_shape=(jax.ShapeDtypeStruct((bsz, q_len, nh_hd), jnp.bfloat16),
                   jax.ShapeDtypeStruct((bsz, q_len, nkv_hd), jnp.bfloat16),
                   jax.ShapeDtypeStruct((bsz, q_len, nkv_hd), jnp.bfloat16)),
        grid_spec=pltpu.PrefetchScalarGridSpec(
            num_scalar_prefetch=0,
            grid=(bsz, nq_tiles),
            in_specs=[
                pl.BlockSpec((1, TQ, hidden), lambda b, i: (b, i, 0)),     # x
                pl.BlockSpec((hidden, nh_hd), lambda b, i: (0, 0)),        # Wq^T
                pl.BlockSpec((hidden, nkv_hd), lambda b, i: (0, 0)),       # Wk^T
                pl.BlockSpec((hidden, nkv_hd), lambda b, i: (0, 0)),       # Wv^T
                pl.BlockSpec((1, TQ, head_dim), lambda b, i: (b, i, 0)),   # cos
                pl.BlockSpec((1, TQ, head_dim), lambda b, i: (b, i, 0)),   # sin (signed)
                pl.BlockSpec((TQ, 1), lambda b, i: (i, 0)),                # logn/sqrt(hd)
            ],
            out_specs=(
                pl.BlockSpec((1, TQ, nh_hd), lambda b, i: (b, i, 0)),
                pl.BlockSpec((1, TQ, nkv_hd), lambda b, i: (b, i, 0)),
                pl.BlockSpec((1, TQ, nkv_hd), lambda b, i: (b, i, 0)),
            ),
        ),
        compiler_params=pltpu.CompilerParams(
            dimension_semantics=("parallel", "parallel")),
    )(x, wq, wk, wv, cos, sin, logn_scale)

    # ---- Kernel 2: flash attention (online softmax, causal mask in-kernel) ----
    flash_kernel = functools.partial(_flash_attn_kernel, q_tile=TQ, kv_tile=TK)
    attn = pl.pallas_call(
        flash_kernel,
        out_shape=jax.ShapeDtypeStruct((bsz, q_len, nh_hd), jnp.bfloat16),
        grid_spec=pltpu.PrefetchScalarGridSpec(
            num_scalar_prefetch=0,
            grid=(bsz, num_heads, nq_tiles, nk_tiles),
            in_specs=[
                pl.BlockSpec((1, TQ, head_dim), lambda b, h, i, j: (b, i, h)),
                pl.BlockSpec((1, TK, head_dim),
                             lambda b, h, i, j: (b, j, h // groups)),      # GQA share
                pl.BlockSpec((1, TK, head_dim),
                             lambda b, h, i, j: (b, j, h // groups)),
            ],
            out_specs=pl.BlockSpec((1, TQ, head_dim), lambda b, h, i, j: (b, i, h)),
            scratch_shapes=[pltpu.VMEM((TQ, 1), jnp.float32),        # running max
                            pltpu.VMEM((TQ, 1), jnp.float32),        # running sum
                            pltpu.VMEM((TQ, head_dim), jnp.float32)],  # acc
        ),
        compiler_params=pltpu.CompilerParams(
            dimension_semantics=("parallel", "parallel", "parallel", "arbitrary")),
    )(q, k, v)

    # ---- Kernel 3: output projection ----
    out = pl.pallas_call(
        _o_proj_kernel,
        out_shape=jax.ShapeDtypeStruct((bsz, q_len, hidden), hidden_states.dtype),
        grid_spec=pltpu.PrefetchScalarGridSpec(
            num_scalar_prefetch=0,
            grid=(bsz, nq_tiles),
            in_specs=[
                pl.BlockSpec((1, TQ, nh_hd), lambda b, i: (b, i, 0)),
                pl.BlockSpec((nh_hd, hidden), lambda b, i: (0, 0)),
            ],
            out_specs=pl.BlockSpec((1, TQ, hidden), lambda b, i: (b, i, 0)),
        ),
        compiler_params=pltpu.CompilerParams(
            dimension_semantics=("parallel", "parallel")),
    )(attn, wo)
    return out


def _reference(hidden_states, attention_mask, position_ids, params, config):
    """Pure-JAX f32 reference mirroring the torch forward (eval mode)."""
    bsz, q_len, hidden = hidden_states.shape
    nh = config["num_attention_heads"]
    nkv = config["num_key_value_heads"]
    hd = hidden // nh
    max_pos = config["max_position_embeddings"]
    theta = config["rope_theta"]
    max_len = config["max_length"]

    q = hidden_states @ params["wq"]
    k = hidden_states @ params["wk"]
    v = hidden_states @ params["wv"]
    q = q.reshape(bsz, q_len, nh, hd).transpose(0, 2, 1, 3)
    k = k.reshape(bsz, q_len, nkv, hd).transpose(0, 2, 1, 3)
    v = v.reshape(bsz, q_len, nkv, hd).transpose(0, 2, 1, 3)

    if q_len > max_pos:
        base = theta * ((2.0 * q_len / max_pos) - 1.0) ** (hd / (hd - 2))
    else:
        base = theta
    inv_freq = 1.0 / (base ** (jnp.arange(0, hd, 2, dtype=jnp.float32) / hd))
    freqs = jnp.outer(jnp.arange(q_len, dtype=jnp.float32), inv_freq)
    emb = jnp.concatenate([freqs, freqs], axis=-1)
    cos = jnp.cos(emb)[position_ids][:, None]           # (bsz,1,q,hd)
    sin = jnp.sin(emb)[position_ids][:, None]

    def rot_half(x):
        return jnp.concatenate([-x[..., hd // 2:], x[..., :hd // 2]], axis=-1)

    q = q * cos + rot_half(q) * sin
    k = k * cos + rot_half(k) * sin
    k = jnp.repeat(k, nh // nkv, axis=1)
    v = jnp.repeat(v, nh // nkv, axis=1)

    pos1 = jnp.arange(1, q_len + 1, dtype=jnp.float32)
    logn = jnp.where(pos1 > max_len, jnp.log(pos1) / math.log(max_len), 1.0)
    q = q * logn[None, None, :, None]

    w = jnp.einsum("bhqd,bhkd->bhqk", q, k) / math.sqrt(hd) + attention_mask
    w = jax.nn.softmax(w.astype(jnp.float32), axis=-1)
    o = jnp.einsum("bhqk,bhkd->bhqd", w, v)
    o = o.transpose(0, 2, 1, 3).reshape(bsz, q_len, hidden)
    return o @ params["wo"]


if __name__ == "__main__":
    # Small config consistent with the module (head_dim kept lane-friendly).
    config = dict(
        hidden_size=256,
        num_attention_heads=2,
        num_key_value_heads=1,          # GQA: num_key_value_groups = 2
        max_position_embeddings=4,      # < seq -> exercises dynamic-NTK rescale
        rope_theta=10000.0,
        max_length=4,                   # < seq -> exercises logn scaling
    )
    bsz, q_len, hidden = 2, 8, config["hidden_size"]
    nh, nkv = config["num_attention_heads"], config["num_key_value_heads"]
    hd = hidden // nh

    key = jax.random.PRNGKey(0)
    kx, kq, kk, kv, ko = jax.random.split(key, 5)
    hidden_states = jax.random.normal(kx, (bsz, q_len, hidden), jnp.float32)
    params = {
        # stored as (in_features, out_features) == torch weight.T; attention_bias=False
        "wq": jax.random.normal(kq, (hidden, nh * hd), jnp.float32) * 0.05,
        "wk": jax.random.normal(kk, (hidden, nkv * hd), jnp.float32) * 0.05,
        "wv": jax.random.normal(kv, (hidden, nkv * hd), jnp.float32) * 0.05,
        "wo": jax.random.normal(ko, (nh * hd, hidden), jnp.float32) * 0.05,
    }

    # HF-style additive causal mask (used by the f32 reference; the kernel
    # regenerates the causal mask in-kernel from positions).
    causal = jnp.tril(jnp.ones((q_len, q_len), dtype=bool))
    attention_mask = jnp.broadcast_to(
        jnp.where(causal, 0.0, jnp.finfo(jnp.float32).min), (bsz, 1, q_len, q_len)
    ).astype(jnp.float32)
    position_ids = jnp.broadcast_to(jnp.arange(q_len, dtype=jnp.int32), (bsz, q_len))

    out = llama_attention_enhance_long(hidden_states, attention_mask, position_ids,
                                       params, config, training=False)
    out = jax.block_until_ready(out)

    ref = _reference(hidden_states, attention_mask, position_ids, params, config)
    assert out.shape == (bsz, q_len, hidden)
    # bf16 MXU operands vs f32 reference -> slightly looser tolerance.
    assert jnp.allclose(out, ref, rtol=5e-2, atol=5e-2), "kernel/reference mismatch"

    print("KERNEL_OK")
</pallas_src>

<mosaic_0001>
module attributes {stable_mosaic.version = 11 : i64} {
  func.func @_qkv_rope_kernel(%arg0: i32, %arg1: i32, %arg2: memref<1x8x256xbf16, #tpu.memory_space<vmem>>, %arg3: memref<256x256xbf16, #tpu.memory_space<vmem>>, %arg4: memref<256x128xbf16, #tpu.memory_space<vmem>>, %arg5: memref<256x128xbf16, #tpu.memory_space<vmem>>, %arg6: memref<1x8x128xf32, #tpu.memory_space<vmem>>, %arg7: memref<1x8x128xf32, #tpu.memory_space<vmem>>, %arg8: memref<8x1xf32, #tpu.memory_space<vmem>>, %arg9: memref<1x8x256xbf16, #tpu.memory_space<vmem>>, %arg10: memref<1x8x128xbf16, #tpu.memory_space<vmem>>, %arg11: memref<1x8x128xbf16, #tpu.memory_space<vmem>>) attributes {dimension_semantics = [#tpu.dimension_semantics<parallel>, #tpu.dimension_semantics<parallel>], iteration_bounds = array<i64: 2, 1>, scalar_prefetch = 0 : i64, scratch_operands = 0 : i64, tpu.core_type = #tpu.core_type<tc>, window_params = [{transform_indices = @transform_0, window_bounds = array<i64: 1, 8, 256>}, {pipeline_mode = #tpu.pipeline_mode<synchronous>, transform_indices = @transform_1, window_bounds = array<i64: 256, 256>}, {pipeline_mode = #tpu.pipeline_mode<synchronous>, transform_indices = @transform_2, window_bounds = array<i64: 256, 128>}, {pipeline_mode = #tpu.pipeline_mode<synchronous>, transform_indices = @transform_3, window_bounds = array<i64: 256, 128>}, {transform_indices = @transform_4, window_bounds = array<i64: 1, 8, 128>}, {transform_indices = @transform_5, window_bounds = array<i64: 1, 8, 128>}, {transform_indices = @transform_6, window_bounds = array<i64: 8, 1>}, {transform_indices = @transform_7, window_bounds = array<i64: 1, 8, 256>}, {transform_indices = @transform_8, window_bounds = array<i64: 1, 8, 128>}, {transform_indices = @transform_9, window_bounds = array<i64: 1, 8, 128>}]} {
    %c0 = arith.constant 0 : index
    %c0_0 = arith.constant 0 : index
    %c0_1 = arith.constant 0 : index
    %0 = vector.load %arg2[%c0, %c0_0, %c0_1] : memref<1x8x256xbf16, #tpu.memory_space<vmem>>, vector<1x8x256xbf16>
    %1 = vector.shape_cast %0 : vector<1x8x256xbf16> to vector<8x256xbf16>
    %c0_2 = arith.constant 0 : index
    %c0_3 = arith.constant 0 : index
    %2 = vector.load %arg3[%c0_2, %c0_3] : memref<256x256xbf16, #tpu.memory_space<vmem>>, vector<256x256xbf16>
    %cst = arith.constant dense<0.000000e+00> : vector<8x256xf32>
    %3 = tpu.matmul %1, %2, %cst {dimension_numbers = #tpu.dot_dimension_numbers<[1], [0], [0], [1], [0, 0, 1, 1], [], []>} : vector<8x256xbf16>, vector<256x256xbf16>, vector<8x256xf32> -> vector<8x256xf32>
    %c0_4 = arith.constant 0 : index
    %c0_5 = arith.constant 0 : index
    %4 = vector.load %arg4[%c0_4, %c0_5] : memref<256x128xbf16, #tpu.memory_space<vmem>>, vector<256x128xbf16>
    %cst_6 = arith.constant dense<0.000000e+00> : vector<8x128xf32>
    %5 = tpu.matmul %1, %4, %cst_6 {dimension_numbers = #tpu.dot_dimension_numbers<[1], [0], [0], [1], [0, 0, 1, 1], [], []>} : vector<8x256xbf16>, vector<256x128xbf16>, vector<8x128xf32> -> vector<8x128xf32>
    %c0_7 = arith.constant 0 : index
    %c0_8 = arith.constant 0 : index
    %6 = vector.load %arg5[%c0_7, %c0_8] : memref<256x128xbf16, #tpu.memory_space<vmem>>, vector<256x128xbf16>
    %cst_9 = arith.constant dense<0.000000e+00> : vector<8x128xf32>
    %7 = tpu.matmul %1, %6, %cst_9 {dimension_numbers = #tpu.dot_dimension_numbers<[1], [0], [0], [1], [0, 0, 1, 1], [], []>} : vector<8x256xbf16>, vector<256x128xbf16>, vector<8x128xf32> -> vector<8x128xf32>
    %c0_10 = arith.constant 0 : index
    %c0_11 = arith.constant 0 : index
    %c0_12 = arith.constant 0 : index
    %8 = vector.load %arg6[%c0_10, %c0_11, %c0_12] : memref<1x8x128xf32, #tpu.memory_space<vmem>>, vector<1x8x128xf32>
    %9 = vector.shape_cast %8 : vector<1x8x128xf32> to vector<8x128xf32>
    %c0_13 = arith.constant 0 : index
    %c0_14 = arith.constant 0 : index
    %c0_15 = arith.constant 0 : index
    %10 = vector.load %arg7[%c0_13, %c0_14, %c0_15] : memref<1x8x128xf32, #tpu.memory_space<vmem>>, vector<1x8x128xf32>
    %11 = vector.shape_cast %10 : vector<1x8x128xf32> to vector<8x128xf32>
    %c0_16 = arith.constant 0 : index
    %c0_17 = arith.constant 0 : index
    %12 = vector.load %arg8[%c0_16, %c0_17] : memref<8x1xf32, #tpu.memory_space<vmem>>, vector<8x1xf32>
    %13 = vector.extract_strided_slice %3 {offsets = [0, 0], sizes = [8, 128], strides = [1, 1]} : vector<8x256xf32> to vector<8x128xf32>
    %14 = arith.mulf %13, %9 : vector<8x128xf32>
    %c64_i32 = arith.constant 64 : i32
    %15 = tpu.dynamic_rotate %13 by %c64_i32 dim 1 : vector<8x128xf32>, i32 -> vector<8x128xf32>
    %16 = arith.mulf %15, %11 : vector<8x128xf32>
    %17 = arith.addf %14, %16 : vector<8x128xf32>
    %18 = vector.broadcast %12 : vector<8x1xf32> to vector<8x128xf32>
    %19 = arith.mulf %17, %18 : vector<8x128xf32>
    %20 = arith.truncf %19 : vector<8x128xf32> to vector<8x128xbf16>
    %c0_18 = arith.constant 0 : index
    %c0_19 = arith.constant 0 : index
    %c0_20 = arith.constant 0 : index
    %21 = vector.load %arg9[%c0_18, %c0_19, %c0_20] : memref<1x8x256xbf16, #tpu.memory_space<vmem>>, vector<1x8x128xbf16>
    %22 = vector.shape_cast %21 : vector<1x8x128xbf16> to vector<8x128xbf16>
    %23 = vector.shape_cast %20 : vector<8x128xbf16> to vector<1x8x128xbf16>
    tpu.vector_store %arg9[%c0_18, %c0_19, %c0_20], %23 {strides = array<i32>} : memref<1x8x256xbf16, #tpu.memory_space<vmem>>, vector<1x8x128xbf16>,
    %24 = vector.extract_strided_slice %3 {offsets = [0, 128], sizes = [8, 128], strides = [1, 1]} : vector<8x256xf32> to vector<8x128xf32>
    %25 = arith.mulf %24, %9 : vector<8x128xf32>
    %c64_i32_21 = arith.constant 64 : i32
    %26 = tpu.dynamic_rotate %24 by %c64_i32_21 dim 1 : vector<8x128xf32>, i32 -> vector<8x128xf32>
    %27 = arith.mulf %26, %11 : vector<8x128xf32>
    %28 = arith.addf %25, %27 : vector<8x128xf32>
    %29 = vector.broadcast %12 : vector<8x1xf32> to vector<8x128xf32>
    %30 = arith.mulf %28, %29 : vector<8x128xf32>
    %31 = arith.truncf %30 : vector<8x128xf32> to vector<8x128xbf16>
    %c0_22 = arith.constant 0 : index
    %c0_23 = arith.constant 0 : index
    %c128 = arith.constant 128 : index
    %32 = vector.load %arg9[%c0_22, %c0_23, %c128] : memref<1x8x256xbf16, #tpu.memory_space<vmem>>, vector<1x8x128xbf16>
    %33 = vector.shape_cast %32 : vector<1x8x128xbf16> to vector<8x128xbf16>
    %34 = vector.shape_cast %31 : vector<8x128xbf16> to vector<1x8x128xbf16>
    tpu.vector_store %arg9[%c0_22, %c0_23, %c128], %34 {strides = array<i32>} : memref<1x8x256xbf16, #tpu.memory_space<vmem>>, vector<1x8x128xbf16>,
    %35 = arith.mulf %5, %9 : vector<8x128xf32>
    %c64_i32_24 = arith.constant 64 : i32
    %36 = tpu.dynamic_rotate %5 by %c64_i32_24 dim 1 : vector<8x128xf32>, i32 -> vector<8x128xf32>
    %37 = arith.mulf %36, %11 : vector<8x128xf32>
    %38 = arith.addf %35, %37 : vector<8x128xf32>
    %39 = arith.truncf %38 : vector<8x128xf32> to vector<8x128xbf16>
    %c0_25 = arith.constant 0 : index
    %c0_26 = arith.constant 0 : index
    %c0_27 = arith.constant 0 : index
    %40 = vector.load %arg10[%c0_25, %c0_26, %c0_27] : memref<1x8x128xbf16, #tpu.memory_space<vmem>>, vector<1x8x128xbf16>
    %41 = vector.shape_cast %40 : vector<1x8x128xbf16> to vector<8x128xbf16>
    %42 = vector.shape_cast %39 : vector<8x128xbf16> to vector<1x8x128xbf16>
    tpu.vector_store %arg10[%c0_25, %c0_26, %c0_27], %42 {strides = array<i32>} : memref<1x8x128xbf16, #tpu.memory_space<vmem>>, vector<1x8x128xbf16>,
    %43 = arith.truncf %7 : vector<8x128xf32> to vector<8x128xbf16>
    %c0_28 = arith.constant 0 : index
    %c0_29 = arith.constant 0 : index
    %c0_30 = arith.constant 0 : index
    %44 = vector.load %arg11[%c0_28, %c0_29, %c0_30] : memref<1x8x128xbf16, #tpu.memory_space<vmem>>, vector<1x8x128xbf16>
    %45 = vector.shape_cast %44 : vector<1x8x128xbf16> to vector<8x128xbf16>
    %46 = vector.shape_cast %43 : vector<8x128xbf16> to vector<1x8x128xbf16>
    tpu.vector_store %arg11[%c0_28, %c0_29, %c0_30], %46 {strides = array<i32>} : memref<1x8x128xbf16, #tpu.memory_space<vmem>>, vector<1x8x128xbf16>,
    return
  }
  func.func @transform_0(%arg0: i32, %arg1: i32) -> (i32, i32, i32) {
    %c0_i32 = arith.constant 0 : i32
    %c0_i32_0 = arith.constant 0 : i32
    return %arg0, %arg1, %c0_i32 : i32, i32, i32
  }
  func.func @transform_1(%arg0: i32, %arg1: i32) -> (i32, i32) {
    %c0_i32 = arith.constant 0 : i32
    %c0_i32_0 = arith.constant 0 : i32
    %c0_i32_1 = arith.constant 0 : i32
    return %c0_i32, %c0_i32_0 : i32, i32
  }
  func.func @transform_2(%arg0: i32, %arg1: i32) -> (i32, i32) {
    %c0_i32 = arith.constant 0 : i32
    %c0_i32_0 = arith.constant 0 : i32
    %c0_i32_1 = arith.constant 0 : i32
    return %c0_i32, %c0_i32_0 : i32, i32
  }
  func.func @transform_3(%arg0: i32, %arg1: i32) -> (i32, i32) {
    %c0_i32 = arith.constant 0 : i32
    %c0_i32_0 = arith.constant 0 : i32
    %c0_i32_1 = arith.constant 0 : i32
    return %c0_i32, %c0_i32_0 : i32, i32
  }
  func.func @transform_4(%arg0: i32, %arg1: i32) -> (i32, i32, i32) {
    %c0_i32 = arith.constant 0 : i32
    %c0_i32_0 = arith.constant 0 : i32
    return %arg0, %arg1, %c0_i32 : i32, i32, i32
  }
  func.func @transform_5(%arg0: i32, %arg1: i32) -> (i32, i32, i32) {
    %c0_i32 = arith.constant 0 : i32
    %c0_i32_0 = arith.constant 0 : i32
    return %arg0, %arg1, %c0_i32 : i32, i32, i32
  }
  func.func @transform_6(%arg0: i32, %arg1: i32) -> (i32, i32) {
    %c0_i32 = arith.constant 0 : i32
    %c0_i32_0 = arith.constant 0 : i32
    return %arg1, %c0_i32 : i32, i32
  }
  func.func @transform_7(%arg0: i32, %arg1: i32) -> (i32, i32, i32) {
    %c0_i32 = arith.constant 0 : i32
    %c0_i32_0 = arith.constant 0 : i32
    return %arg0, %arg1, %c0_i32 : i32, i32, i32
  }
  func.func @transform_8(%arg0: i32, %arg1: i32) -> (i32, i32, i32) {
    %c0_i32 = arith.constant 0 : i32
    %c0_i32_0 = arith.constant 0 : i32
    return %arg0, %arg1, %c0_i32 : i32, i32, i32
  }
  func.func @transform_9(%arg0: i32, %arg1: i32) -> (i32, i32, i32) {
    %c0_i32 = arith.constant 0 : i32
    %c0_i32_0 = arith.constant 0 : i32
    return %arg0, %arg1, %c0_i32 : i32, i32, i32
  }
}

</mosaic_0001>

<llo_original>
// kernel: tpu_custom_call.1
$region0: #{tpu_custom_call.1}
  #allocation0 [shape = 'u32[]', space=smem, size = 0x4, offset = 0x4, fixed_abs, tag = 'smem constant byte address 0x4 - core index']
  #allocation1 [shape = 'u32[144,128]{1,0:T(1,128)}', space=vmem, size = 0x12000, scoped, tag = 'internal scratch']
  %s0 = inlined_call_operand.hbm [shape: bf16[2,8,256], index: 0, kind: input, shape index: {}]
  %s1 = inlined_call_operand.hbm [shape: bf16[256,256], index: 1, kind: input, shape index: {}]
  %s2 = inlined_call_operand.hbm [shape: bf16[256,128], index: 2, kind: input, shape index: {}]
  %s3 = inlined_call_operand.hbm [shape: bf16[256,128], index: 3, kind: input, shape index: {}]
  %s4 = inlined_call_operand.vmem [shape: f32[2,8,128], index: 4, kind: input, shape index: {}]
  %s5 = inlined_call_operand.hbm [shape: f32[2,8,128], index: 5, kind: input, shape index: {}]
  %s6 = inlined_call_operand.vmem [shape: f32[8,1], index: 6, kind: input, shape index: {}]
  %s7 = inlined_call_operand.hbm [shape: bf16[2,8,256], index: 7, kind: output, shape index: {0}]
  %s8 = inlined_call_operand.hbm [shape: bf16[2,8,128], index: 8, kind: output, shape index: {1}]
  %s9 = inlined_call_operand.hbm [shape: bf16[2,8,128], index: 9, kind: output, shape index: {2}]
  %10 = xla_tuple %s7, %s8, %s9
  %s11 = sld [smem:[#allocation0]]
  $region97: #{tpu_custom_call.1} parent=0
    _
  %s13 = ssub.s32 1, %s11
  %s14 = scalar_select 0, %s13, %s11
  $region1: #{tpu_custom_call.1} parent=0
    #allocation2 [shape = 'u8[8192]{0}', space=vmem, size = 0x2000, scoped, tag = 'input window, operand 0']
    #allocation3 [shape = 's32[2]{0}', space=sflag, size = 0x8, scoped, tag = 'scoped memory for tpu_custom_call.1']
    #allocation4 [shape = 's32[2]{0}', space=sflag, size = 0x8, scoped, tag = 'scoped memory for tpu_custom_call.1']
    #allocation5 [shape = 'u8[131072]{0}', space=vmem, size = 0x20000, scoped, tag = 'input window, operand 1, single buffered']
    #allocation6 [shape = 's32[1]{0}', space=sflag, size = 0x4, scoped, tag = 'scoped memory for tpu_custom_call.1']
    #allocation7 [shape = 'u8[65536]{0}', space=vmem, size = 0x10000, scoped, tag = 'input window, operand 2, single buffered']
    #allocation8 [shape = 'u8[65536]{0}', space=vmem, size = 0x10000, scoped, tag = 'input window, operand 3, single buffered']
    #allocation9 [shape = 's32[1]{0}', space=sflag, size = 0x4, scoped, tag = 'scoped memory for tpu_custom_call.1']
    #allocation10 [shape = 'u8[8192]{0}', space=vmem, size = 0x2000, scoped, tag = 'input window, operand 5']
    #allocation11 [shape = 'u8[8192]{0}', space=vmem, size = 0x2000, scoped, tag = 'output window, operand 0']
    #allocation12 [shape = 'u8[4096]{0}', space=vmem, size = 0x1000, scoped, tag = 'output window, operand 1']
    #allocation13 [shape = 's32[2]{0}', space=sflag, size = 0x8, scoped, tag = 'scoped memory for tpu_custom_call.1']
    #allocation14 [shape = 'u8[4096]{0}', space=vmem, size = 0x1000, scoped, tag = 'output window, operand 2']
    %15 = vsyncpa [#allocation3], 0
    %s16 = scalar_lea.sflag [#allocation3], 1
    %17 = vsyncpa %s16, 0
    %18 = vsyncpa [#allocation6], 0
    %19 = vsyncpa [#allocation9], 0
    %20 = vsyncpa [#allocation4], 0
    %s21 = scalar_lea.sflag [#allocation4], 1
    %22 = vsyncpa %s21, 0
    %23 = vsyncpa [#allocation13], 0
    %s24 = scalar_lea.sflag [#allocation13], 1
    %25 = vsyncpa %s24, 0
    loop: start=0, step=1, limit=4
    $region2: #{tpu_custom_call.1} parent=1 // loop_pre_header
      _
    $region3: #{tpu_custom_call.1} parent=1 // loop_header
      %s27 = sphi 0, %s31
      %p28 = scmp.ge.s32.totalorder %s27, 4
      %s34 = sphi 0, %s46
      %s35 = sphi 0, %s42
      %s36 = sphi 0, %s34
      %s37 = sphi 0, %s35
      %s38 = sphi 0, %s36
      %s39 = sphi 0, %s37
      %s51 = sphi 0, %s53
      %s54 = sphi 0, %s51
      %s55 = sphi 0, %s54
      %s71 = sphi 0, %s55
      %s75 = sphi 0, %s75
      %s77 = sphi 0, %s75
      %s78 = sphi 0, %s77
      %s92 = sphi 0, %s78
      %s96 = sphi 0, %s96
      %s98 = sphi 0, %s96
      %s99 = sphi 0, %s98
      %s113 = sphi 0, %s99
      %s117 = sphi 0, %s117
      %s119 = sphi 0, %s117
      %s120 = sphi 0, %s119
      %s134 = sphi 0, %s120
      %s142 = sphi 0, %s144
      %s145 = sphi 0, %s142
      %s146 = sphi 0, %s145
      %s162 = sphi 0, %s146
      %s170 = sphi 0, %s172
      %s173 = sphi 0, %s170
      %s174 = sphi 0, %s173
      %s190 = sphi 0, %s174
      %s196 = sphi 0, %s198
      %s199 = sphi 0, %s196
      %s200 = sphi 0, %s199
      %s216 = sphi 0, %s200
      %s224 = sphi 0, %s226
      %s227 = sphi 0, %s224
      %s228 = sphi 0, %s227
      %s244 = sphi 0, %s228
      %s252 = sphi 0, %s254
      %s255 = sphi 0, %s252
      %s256 = sphi 0, %s255
      %s272 = sphi 0, %s256
      %s280 = sphi 0, %s282
      %s283 = sphi 0, %s280
      %s284 = sphi 0, %s283
      %s300 = sphi 0, %s284
    $region4: #{tpu_custom_call.1} parent=1 // loop_header_branch
      %30 = sbr.rel (%p28) target = $region8
    $region5: #{tpu_custom_call.1} parent=1 // loop_body
      %s32 = ssub.s32 %s27, 1
      %s33 = ssub.s32 %s27, 2
      %s40 = sadd.s32 1, %s35
      %p41 = scmp.ge.s32.totalorder %s40, 1
      %s42 = scalar_select %p41, 0, %s40
      %s43 = sadd.s32 1, %s34
      %s44 = scalar_select %p41, %s43, %s34
      %p45 = scmp.ge.s32.totalorder %s44, 2
      %s46 = scalar_select %p45, 0, %s44
      %s47 = ssub.s32 %s34, %s46
      %s48 = ssub.s32 %s35, %s42
      %s49 = sor.u32 %s47, %s48
      %p50 = scmp.eq.s32.totalorder %s49, 0
      %s52 = sadd.s32 %s51, 1
      %s53 = scalar_select %p50, %s51, %s52
      %p56 = pneg %p50
      %p57 = scmp.eq.s32.totalorder %s27, 1
      %p58 = por %p56, %p57
      %p59 = scmp.ne.s32.totalorder %s51, %s54
      %p60 = scmp.eq.s32.totalorder %s27, 0
      %p61 = por %p59, %p60
      %p62 = scmp.ne.s32.totalorder %s51, %s54
      %p63 = scmp.eq.s32.totalorder %s32, 1
      %p64 = por %p62, %p63
      %p65 = scmp.ne.s32.totalorder %s54, %s55
      %p66 = scmp.eq.s32.totalorder %s32, 0
      %p67 = por %p65, %p66
      %p68 = scmp.ne.s32.totalorder %s54, %s55
      %p69 = scmp.eq.s32.totalorder %s33, 1
      %p70 = por %p68, %p69
      %p72 = scmp.ne.s32.totalorder %s55, %s71
      %p73 = scmp.eq.s32.totalorder %s33, 0
      %p74 = por %p72, %p73
      %s76 = sadd.s32 %s75, 1
      %p79 = scmp.eq.s32.totalorder %s27, 1
      %p80 = scmp.ne.s32.totalorder %s75, %s77
      %p81 = scmp.eq.s32.totalorder %s27, 0
      %p82 = por %p80, %p81
      %p83 = scmp.ne.s32.totalorder %s75, %s77
      %p84 = scmp.eq.s32.totalorder %s32, 1
      %p85 = por %p83, %p84
      %p86 = scmp.ne.s32.totalorder %s77, %s78
      %p87 = scmp.eq.s32.totalorder %s32, 0
      %p88 = por %p86, %p87
      %p89 = scmp.ne.s32.totalorder %s77, %s78
      %p90 = scmp.eq.s32.totalorder %s33, 1
      %p91 = por %p89, %p90
      %p93 = scmp.ne.s32.totalorder %s78, %s92
      %p94 = scmp.eq.s32.totalorder %s33, 0
      %p95 = por %p93, %p94
      %s97 = sadd.s32 %s96, 1
      %p100 = scmp.eq.s32.totalorder %s27, 1
      %p101 = scmp.ne.s32.totalorder %s96, %s98
      %p102 = scmp.eq.s32.totalorder %s27, 0
      %p103 = por %p101, %p102
      %p104 = scmp.ne.s32.totalorder %s96, %s98
      %p105 = scmp.eq.s32.totalorder %s32, 1
      %p106 = por %p104, %p105
      %p107 = scmp.ne.s32.totalorder %s98, %s99
      %p108 = scmp.eq.s32.totalorder %s32, 0
      %p109 = por %p107, %p108
      %p110 = scmp.ne.s32.totalorder %s98, %s99
      %p111 = scmp.eq.s32.totalorder %s33, 1
      %p112 = por %p110, %p111
      %p114 = scmp.ne.s32.totalorder %s99, %s113
      %p115 = scmp.eq.s32.totalorder %s33, 0
      %p116 = por %p114, %p115
      %s118 = sadd.s32 %s117, 1
      %p121 = scmp.eq.s32.totalorder %s27, 1
      %p122 = scmp.ne.s32.totalorder %s117, %s119
      %p123 = scmp.eq.s32.totalorder %s27, 0
      %p124 = por %p122, %p123
      %p125 = scmp.ne.s32.totalorder %s117, %s119
      %p126 = scmp.eq.s32.totalorder %s32, 1
      %p127 = por %p125, %p126
      %p128 = scmp.ne.s32.totalorder %s119, %s120
      %p129 = scmp.eq.s32.totalorder %s32, 0
      %p130 = por %p128, %p129
      %p131 = scmp.ne.s32.totalorder %s119, %s120
      %p132 = scmp.eq.s32.totalorder %s33, 1
      %p133 = por %p131, %p132
      %p135 = scmp.ne.s32.totalorder %s120, %s134
      %p136 = scmp.eq.s32.totalorder %s33, 0
      %p137 = por %p135, %p136
      %s138 = ssub.s32 %s34, %s46
      %s139 = ssub.s32 %s35, %s42
      %s140 = sor.u32 %s138, %s139
      %p141 = scmp.eq.s32.totalorder %s140, 0
      %s143 = sadd.s32 %s142, 1
      %s144 = scalar_select %p141, %s142, %s143
      %p147 = pneg %p141
      %p148 = scmp.eq.s32.totalorder %s27, 1
      %p149 = por %p147, %p148
      %p150 = scmp.ne.s32.totalorder %s142, %s145
      %p151 = scmp.eq.s32.totalorder %s27, 0
      %p152 = por %p150, %p151
      %p153 = scmp.ne.s32.totalorder %s142, %s145
      %p154 = scmp.eq.s32.totalorder %s32, 1
      %p155 = por %p153, %p154
      %p156 = scmp.ne.s32.totalorder %s145, %s146
      %p157 = scmp.eq.s32.totalorder %s32, 0
      %p158 = por %p156, %p157
      %p159 = scmp.ne.s32.totalorder %s145, %s146
      %p160 = scmp.eq.s32.totalorder %s33, 1
      %p161 = por %p159, %p160
      %p163 = scmp.ne.s32.totalorder %s146, %s162
      %p164 = scmp.eq.s32.totalorder %s33, 0
      %p165 = por %p163, %p164
      %s166 = ssub.s32 %s34, %s46
      %s167 = ssub.s32 %s35, %s42
      %s168 = sor.u32 %s166, %s167
      %p169 = scmp.eq.s32.totalorder %s168, 0
      %s171 = sadd.s32 %s170, 1
      %s172 = scalar_select %p169, %s170, %s171
      %p175 = pneg %p169
      %p176 = scmp.eq.s32.totalorder %s27, 1
      %p177 = por %p175, %p176
      %p178 = scmp.ne.s32.totalorder %s170, %s173
      %p179 = scmp.eq.s32.totalorder %s27, 0
      %p180 = por %p178, %p179
      %p181 = scmp.ne.s32.totalorder %s170, %s173
      %p182 = scmp.eq.s32.totalorder %s32, 1
      %p183 = por %p181, %p182
      %p184 = scmp.ne.s32.totalorder %s173, %s174
      %p185 = scmp.eq.s32.totalorder %s32, 0
      %p186 = por %p184, %p185
      %p187 = scmp.ne.s32.totalorder %s173, %s174
      %p188 = scmp.eq.s32.totalorder %s33, 1
      %p189 = por %p187, %p188
      %p191 = scmp.ne.s32.totalorder %s174, %s190
      %p192 = scmp.eq.s32.totalorder %s33, 0
      %p193 = por %p191, %p192
      %s194 = ssub.s32 %s35, %s42
      %p195 = scmp.eq.s32.totalorder %s194, 0
      %s197 = sadd.s32 %s196, 1
      %s198 = scalar_select %p195, %s196, %s197
      %p201 = pneg %p195
      %p202 = scmp.eq.s32.totalorder %s27, 1
      %p203 = por %p201, %p202
      %p204 = scmp.ne.s32.totalorder %s196, %s199
      %p205 = scmp.eq.s32.totalorder %s27, 0
      %p206 = por %p204, %p205
      %p207 = scmp.ne.s32.totalorder %s196, %s199
      %p208 = scmp.eq.s32.totalorder %s32, 1
      %p209 = por %p207, %p208
      %p210 = scmp.ne.s32.totalorder %s199, %s200
      %p211 = scmp.eq.s32.totalorder %s32, 0
      %p212 = por %p210, %p211
      %p213 = scmp.ne.s32.totalorder %s199, %s200
      %p214 = scmp.eq.s32.totalorder %s33, 1
      %p215 = por %p213, %p214
      %p217 = scmp.ne.s32.totalorder %s200, %s216
      %p218 = scmp.eq.s32.totalorder %s33, 0
      %p219 = por %p217, %p218
      %s220 = ssub.s32 %s34, %s46
      %s221 = ssub.s32 %s35, %s42
      %s222 = sor.u32 %s220, %s221
      %p223 = scmp.eq.s32.totalorder %s222, 0
      %s225 = sadd.s32 %s224, 1
      %s226 = scalar_select %p223, %s224, %s225
      %p229 = pneg %p223
      %p230 = scmp.eq.s32.totalorder %s27, 1
      %p231 = por %p229, %p230
      %p232 = scmp.ne.s32.totalorder %s224, %s227
      %p233 = scmp.eq.s32.totalorder %s27, 0
      %p234 = por %p232, %p233
      %p235 = scmp.ne.s32.totalorder %s224, %s227
      %p236 = scmp.eq.s32.totalorder %s32, 1
      %p237 = por %p235, %p236
      %p238 = scmp.ne.s32.totalorder %s227, %s228
      %p239 = scmp.eq.s32.totalorder %s32, 0
      %p240 = por %p238, %p239
      %p241 = scmp.ne.s32.totalorder %s227, %s228
      %p242 = scmp.eq.s32.totalorder %s33, 1
      %p243 = por %p241, %p242
      %p245 = scmp.ne.s32.totalorder %s228, %s244
      %p246 = scmp.eq.s32.totalorder %s33, 0
      %p247 = por %p245, %p246
      %s248 = ssub.s32 %s34, %s46
      %s249 = ssub.s32 %s35, %s42
      %s250 = sor.u32 %s248, %s249
      %p251 = scmp.eq.s32.totalorder %s250, 0
      %s253 = sadd.s32 %s252, 1
      %s254 = scalar_select %p251, %s252, %s253
      %p257 = pneg %p251
      %p258 = scmp.eq.s32.totalorder %s27, 1
      %p259 = por %p257, %p258
      %p260 = scmp.ne.s32.totalorder %s252, %s255
      %p261 = scmp.eq.s32.totalorder %s27, 0
      %p262 = por %p260, %p261
      %p263 = scmp.ne.s32.totalorder %s252, %s255
      %p264 = scmp.eq.s32.totalorder %s32, 1
      %p265 = por %p263, %p264
      %p266 = scmp.ne.s32.totalorder %s255, %s256
      %p267 = scmp.eq.s32.totalorder %s32, 0
      %p268 = por %p266, %p267
      %p269 = scmp.ne.s32.totalorder %s255, %s256
      %p270 = scmp.eq.s32.totalorder %s33, 1
      %p271 = por %p269, %p270
      %p273 = scmp.ne.s32.totalorder %s256, %s272
      %p274 = scmp.eq.s32.totalorder %s33, 0
      %p275 = por %p273, %p274
      %s276 = ssub.s32 %s34, %s46
      %s277 = ssub.s32 %s35, %s42
      %s278 = sor.u32 %s276, %s277
      %p279 = scmp.eq.s32.totalorder %s278, 0
      %s281 = sadd.s32 %s280, 1
      %s282 = scalar_select %p279, %s280, %s281
      %p285 = pneg %p279
      %p286 = scmp.eq.s32.totalorder %s27, 1
      %p287 = por %p285, %p286
      %p288 = scmp.ne.s32.totalorder %s280, %s283
      %p289 = scmp.eq.s32.totalorder %s27, 0
      %p290 = por %p288, %p289
      %p291 = scmp.ne.s32.totalorder %s280, %s283
      %p292 = scmp.eq.s32.totalorder %s32, 1
      %p293 = por %p291, %p292
      %p294 = scmp.ne.s32.totalorder %s283, %s284
      %p295 = scmp.eq.s32.totalorder %s32, 0
      %p296 = por %p294, %p295
      %p297 = scmp.ne.s32.totalorder %s283, %s284
      %p298 = scmp.eq.s32.totalorder %s33, 1
      %p299 = por %p297, %p298
      %p301 = scmp.ne.s32.totalorder %s284, %s300
      %p302 = scmp.eq.s32.totalorder %s33, 0
      %p303 = por %p301, %p302
      %p304 = scmp.le.s32.totalorder 1, %s27
      %p305 = scmp.lt.s32.totalorder %s27, 3
      %p306 = pnand %p304, %p305
      %p307 = pneg %p306
      // Predicated region
      $region9: #{tpu_custom_call.1} parent=5 // pred_check
        _
      $region10: #{tpu_custom_call.1} parent=5 // pred_check_branch
        %309 = sbr.rel (%p306) target = $region12
      $region11: #{tpu_custom_call.1} parent=5 // pred_region
        %s310 = ssub.s32 %s27, 1
        // Predicated region
        $region13: #{tpu_custom_call.1} parent=11 // pred_check
          %p311 = pneg %p88
        $region14: #{tpu_custom_call.1} parent=11 // pred_check_branch
          %313 = sbr.rel (%p311) target = $region16
        $region15: #{tpu_custom_call.1} parent=11 // pred_region
          %s315 = ssub.s32 4096, 4096
          %316 = vsyncadd [#allocation6], %s315
          %s317 = sshll.u32 [#allocation5], 4
          %s318 = int_to_ptr.vmem [resolvable:$true] %s317
          %323 = dma.hbm_to_vmem [thread:$0]  %s1, 4096, %s318, [#allocation6], 128, 128, 8
        $region16: #{tpu_custom_call.1} parent=11 // pred_fallthru
          _
        // Predicated region
        $region17: #{tpu_custom_call.1} parent=11 // pred_check
          %p324 = pneg %p109
        $region18: #{tpu_custom_call.1} parent=11 // pred_check_branch
          %326 = sbr.rel (%p324) target = $region20
        $region19: #{tpu_custom_call.1} parent=11 // pred_region
          %s328 = ssub.s32 2048, 2048
          %329 = vsyncadd [#allocation6], %s328
          %s330 = sshll.u32 [#allocation7], 4
          %s331 = int_to_ptr.vmem [resolvable:$true] %s330
          %336 = dma.hbm_to_vmem [thread:$0]  %s2, 2048, %s331, [#allocation6], 64, 64, 4
        $region20: #{tpu_custom_call.1} parent=11 // pred_fallthru
          _
        // Predicated region
        $region21: #{tpu_custom_call.1} parent=11 // pred_check
          %p337 = pneg %p130
        $region22: #{tpu_custom_call.1} parent=11 // pred_check_branch
          %339 = sbr.rel (%p337) target = $region24
        $region23: #{tpu_custom_call.1} parent=11 // pred_region
          %s341 = ssub.s32 2048, 2048
          %342 = vsyncadd [#allocation9], %s341
          %s343 = sshll.u32 [#allocation8], 4
          %s344 = int_to_ptr.vmem [resolvable:$true] %s343
          %349 = dma.hbm_to_vmem [thread:$0]  %s3, 2048, %s344, [#allocation9], 64, 64, 4
        $region24: #{tpu_custom_call.1} parent=11 // pred_fallthru
          _
        // Predicated region
        $region25: #{tpu_custom_call.1} parent=11 // pred_check
          %p350 = pneg %p212
        $region26: #{tpu_custom_call.1} parent=11 // pred_check_branch
          %352 = sbr.rel (%p350) target = $region28
        $region27: #{tpu_custom_call.1} parent=11 // pred_region
          %p353 = scmp.lt.s32.totalorder %s37, 0
          %s354 = scalar_select %p353, %s37, 0
          %s355 = smul.addr %s354, 8
          %s356 = scalar_lea.vmem %s6, %s355
        $region28: #{tpu_custom_call.1} parent=11 // pred_fallthru
          _
      $region12: #{tpu_custom_call.1} parent=5 // pred_fallthru
        _
      %p357 = scmp.lt.s32.totalorder %s27, 2
      // Predicated region
      $region29: #{tpu_custom_call.1} parent=5 // pred_check
        %p358 = pneg %p357
      $region30: #{tpu_custom_call.1} parent=5 // pred_check_branch
        %360 = sbr.rel (%p358) target = $region32
      $region31: #{tpu_custom_call.1} parent=5 // pred_region
        // Predicated region
        $region33: #{tpu_custom_call.1} parent=31 // pred_check
          %p361 = pneg %p61
        $region34: #{tpu_custom_call.1} parent=31 // pred_check_branch
          %363 = sbr.rel (%p361) target = $region36
        $region35: #{tpu_custom_call.1} parent=31 // pred_region
          %s364 = sand.u32 %s27, 1
          %s365 = scalar_lea.sflag [#allocation3], %s364
          %s366 = sand.u32 %s51, 1
          %s367 = smul.addr %s366, 8
          %s368 = scalar_lea.vmem [#allocation2], %s367
          %s370 = ssub.s32 128, 128
          %371 = vsyncadd %s365, %s370
          %s372 = smul.addr %s35, 2
          %s373 = smul.addr %s34, 2
          %s374 = sadd.s32 %s372, %s373
          %s375 = smul.addr %s374, 64
          %s376 = scalar_lea.hbm %s0, %s375
          %s378 = sshll.u32 %s368, 4
          %s379 = int_to_ptr.vmem [resolvable:$true] %s378
          %381 = dma.hbm_to_vmem [thread:$0]  %s376, 128, %s379, %s365
        $region36: #{tpu_custom_call.1} parent=31 // pred_fallthru
          _
        // Predicated region
        $region37: #{tpu_custom_call.1} parent=31 // pred_check
          %p382 = pneg %p152
        $region38: #{tpu_custom_call.1} parent=31 // pred_check_branch
          %384 = sbr.rel (%p382) target = $region40
        $region39: #{tpu_custom_call.1} parent=31 // pred_region
          %p385 = scmp.lt.s32.totalorder %s34, 1
          %s386 = scalar_select %p385, %s34, 1
          %p387 = scmp.lt.s32.totalorder %s35, 0
          %s388 = scalar_select %p387, %s35, 0
          %s389 = sadd.s32 %s388, %s386
          %s390 = smul.addr %s389, 8
          %s391 = scalar_lea.vmem %s4, %s390
        $region40: #{tpu_custom_call.1} parent=31 // pred_fallthru
          _
        // Predicated region
        $region41: #{tpu_custom_call.1} parent=31 // pred_check
          %p392 = pneg %p180
        $region42: #{tpu_custom_call.1} parent=31 // pred_check_branch
          %394 = sbr.rel (%p392) target = $region44
        $region43: #{tpu_custom_call.1} parent=31 // pred_region
          %s395 = sand.u32 %s27, 1
          %s396 = scalar_lea.sflag [#allocation3], %s395
          %s397 = sand.u32 %s170, 1
          %s398 = smul.addr %s397, 8
          %s399 = scalar_lea.vmem [#allocation10], %s398
          %s401 = ssub.s32 128, 128
          %402 = vsyncadd %s396, %s401
          %s403 = sadd.s32 %s35, %s34
          %s404 = smul.addr %s403, 128
          %s405 = scalar_lea.hbm %s5, %s404
          %s407 = sshll.u32 %s399, 4
          %s408 = int_to_ptr.vmem [resolvable:$true] %s407
          %410 = dma.hbm_to_vmem [thread:$0]  %s405, 128, %s408, %s396
        $region44: #{tpu_custom_call.1} parent=31 // pred_fallthru
          _
      $region32: #{tpu_custom_call.1} parent=5 // pred_fallthru
        _
      %p411 = scmp.le.s32.totalorder 1, %s27
      %p412 = scmp.lt.s32.totalorder %s27, 3
      %p413 = pnand %p411, %p412
      %p414 = pneg %p413
      // Predicated region
      $region45: #{tpu_custom_call.1} parent=5 // pred_check
        _
      $region46: #{tpu_custom_call.1} parent=5 // pred_check_branch
        %416 = sbr.rel (%p413) target = $region48
      $region47: #{tpu_custom_call.1} parent=5 // pred_region
        %s417 = ssub.s32 %s27, 1
        %s418 = sand.u32 %s32, 1
        %s419 = scalar_lea.sflag [#allocation3], %s418
        %s420 = sand.u32 %s54, 1
        %s421 = smul.addr %s420, 8
        %s422 = scalar_lea.vmem [#allocation2], %s421
        // Predicated region
        $region49: #{tpu_custom_call.1} parent=47 // pred_check
          %p423 = pneg %p67
        $region50: #{tpu_custom_call.1} parent=47 // pred_check_branch
          %425 = sbr.rel (%p423) target = $region52
        $region51: #{tpu_custom_call.1} parent=47 // pred_region
          %426 = dma.done %s419, 128
        $region52: #{tpu_custom_call.1} parent=47 // pred_fallthru
          _
        // Predicated region
        $region53: #{tpu_custom_call.1} parent=47 // pred_check
          %p427 = pneg %p88
        $region54: #{tpu_custom_call.1} parent=47 // pred_check_branch
          %429 = sbr.rel (%p427) target = $region56
        $region55: #{tpu_custom_call.1} parent=47 // pred_region
          %430 = dma.done [#allocation6], 4096
        $region56: #{tpu_custom_call.1} parent=47 // pred_fallthru
          _
        // Predicated region
        $region57: #{tpu_custom_call.1} parent=47 // pred_check
          %p431 = pneg %p109
        $region58: #{tpu_custom_call.1} parent=47 // pred_check_branch
          %433 = sbr.rel (%p431) target = $region60
        $region59: #{tpu_custom_call.1} parent=47 // pred_region
          %434 = dma.done [#allocation6], 2048
        $region60: #{tpu_custom_call.1} parent=47 // pred_fallthru
          _
        // Predicated region
        $region61: #{tpu_custom_call.1} parent=47 // pred_check
          %p435 = pneg %p130
        $region62: #{tpu_custom_call.1} parent=47 // pred_check_branch
          %437 = sbr.rel (%p435) target = $region64
        $region63: #{tpu_custom_call.1} parent=47 // pred_region
          %438 = dma.done [#allocation9], 2048
        $region64: #{tpu_custom_call.1} parent=47 // pred_fallthru
          _
        %s439 = sand.u32 %s32, 1
        %s440 = scalar_lea.sflag [#allocation3], %s439
        %s441 = sand.u32 %s173, 1
        %s442 = smul.addr %s441, 8
        %s443 = scalar_lea.vmem [#allocation10], %s442
        // Predicated region
        $region65: #{tpu_custom_call.1} parent=47 // pred_check
          %p444 = pneg %p186
        $region66: #{tpu_custom_call.1} parent=47 // pred_check_branch
          %446 = sbr.rel (%p444) target = $region68
        $region67: #{tpu_custom_call.1} parent=47 // pred_region
          %447 = dma.done %s440, 128
        $region68: #{tpu_custom_call.1} parent=47 // pred_fallthru
          _
        %s448 = sand.u32 %s32, 1
        %s449 = scalar_lea.sflag [#allocation3], %s448
        %s450 = sand.u32 %s54, 1
        %s451 = smul.addr %s450, 8
        %s452 = scalar_lea.vmem [#allocation2], %s451
        %p453 = pneg %p67
        %p454 = pneg %p64
        %p455 = pneg %p88
        %p456 = pneg %p85
        %p457 = pneg %p109
        %p458 = pneg %p106
        %p459 = pneg %p130
        %p460 = pneg %p127
        %p461 = scmp.lt.s32.totalorder %s36, 1
        %s462 = scalar_select %p461, %s36, 1
        %p463 = scmp.lt.s32.totalorder %s37, 0
        %s464 = scalar_select %p463, %s37, 0
        %s465 = sadd.s32 %s464, %s462
        %s466 = smul.addr %s465, 8
        %s467 = scalar_lea.vmem %s4, %s466
        %p468 = pneg %p158
        %p469 = pneg %p155
        %s470 = sand.u32 %s32, 1
        %s471 = scalar_lea.sflag [#allocation3], %s470
        %s472 = sand.u32 %s173, 1
        %s473 = smul.addr %s472, 8
        %s474 = scalar_lea.vmem [#allocation10], %s473
        %p475 = pneg %p186
        %p476 = pneg %p183
        %p477 = scmp.lt.s32.totalorder %s37, 0
        %s478 = scalar_select %p477, %s37, 0
        %s479 = smul.addr %s478, 8
        %s480 = scalar_lea.vmem %s6, %s479
        %p481 = pneg %p212
        %p482 = pneg %p209
        %p483 = pneg %p240
        %p484 = pneg %p237
        %s485 = sand.u32 %s227, 1
        %s486 = scalar_lea.sflag [#allocation4], %s485
        %s487 = sand.u32 %s227, 1
        %s488 = smul.addr %s487, 8
        %s489 = scalar_lea.vmem [#allocation11], %s488
        %p490 = pneg %p268
        %p491 = pneg %p265
        %s492 = sand.u32 %s32, 1
        %s493 = scalar_lea.sflag [#allocation13], %s492
        %s494 = sand.u32 %s255, 1
        %s495 = smul.addr %s494, 4
        %s496 = scalar_lea.vmem [#allocation12], %s495
        %p497 = pneg %p296
        %p498 = pneg %p293
        %s499 = sand.u32 %s32, 1
        %s500 = scalar_lea.sflag [#allocation13], %s499
        %s501 = sand.u32 %s283, 1
        %s502 = smul.addr %s501, 4
        %s503 = scalar_lea.vmem [#allocation14], %s502
        %p504 = scmp.lt.s32.totalorder %s36, 1
        %s505 = scalar_select %p504, %s36, 1
        %p506 = scmp.lt.s32.totalorder %s37, 0
        %s507 = scalar_select %p506, %s37, 0
        %s508 = sadd.s32 %s507, %s505
        %s509 = smul.addr %s508, 8
        %s510 = scalar_lea.vmem %s4, %s509
        %p511 = scmp.lt.s32.totalorder %s37, 0
        %s512 = scalar_select %p511, %s37, 0
        %s513 = smul.addr %s512, 8
        %s514 = scalar_lea.vmem %s6, %s513
        %v516 = vld [vmem:[%s422] sm:$0xff]
        %v517 = vld [vmem:[#allocation5] sm:$0xff]
        %v518 = vld [vmem:[#allocation5 + $0x8] sm:$0xff]
        %v519 = vld [vmem:[#allocation5 + $0x10] sm:$0xff]
        %v520 = vld [vmem:[#allocation5 + $0x18] sm:$0xff]
        %v521 = vld [vmem:[#allocation5 + $0x20] sm:$0xff]
        %v522 = vld [vmem:[#allocation5 + $0x28] sm:$0xff]
        %v523 = vld [vmem:[#allocation5 + $0x30] sm:$0xff]
        %v524 = vld [vmem:[#allocation5 + $0x38] sm:$0xff]
        %v525 = vld [vmem:[#allocation5 + $0x40] sm:$0xff]
        %v526 = vld [vmem:[#allocation5 + $0x48] sm:$0xff]
        %v527 = vld [vmem:[#allocation5 + $0x50] sm:$0xff]
        %v528 = vld [vmem:[#allocation5 + $0x58] sm:$0xff]
        %v529 = vld [vmem:[#allocation5 + $0x60] sm:$0xff]
        %v530 = vld [vmem:[#allocation5 + $0x68] sm:$0xff]
        %v531 = vld [vmem:[#allocation5 + $0x70] sm:$0xff]
        %v532 = vld [vmem:[#allocation5 + $0x78] sm:$0xff]
        %v533 = vld [vmem:[#allocation5 + $0x80] sm:$0xff]
        %v534 = vld [vmem:[#allocation5 + $0x88] sm:$0xff]
        %v535 = vld [vmem:[#allocation5 + $0x90] sm:$0xff]
        %v536 = vld [vmem:[#allocation5 + $0x98] sm:$0xff]
        %v537 = vld [vmem:[#allocation5 + $0xa0] sm:$0xff]
        %v538 = vld [vmem:[#allocation5 + $0xa8] sm:$0xff]
        %v539 = vld [vmem:[#allocation5 + $0xb0] sm:$0xff]
        %v540 = vld [vmem:[#allocation5 + $0xb8] sm:$0xff]
        %v541 = vld [vmem:[#allocation5 + $0xc0] sm:$0xff]
        %v542 = vld [vmem:[#allocation5 + $0xc8] sm:$0xff]
        %v543 = vld [vmem:[#allocation5 + $0xd0] sm:$0xff]
        %v544 = vld [vmem:[#allocation5 + $0xd8] sm:$0xff]
        %v545 = vld [vmem:[#allocation5 + $0xe0] sm:$0xff]
        %v546 = vld [vmem:[#allocation5 + $0xe8] sm:$0xff]
        %v547 = vld [vmem:[#allocation5 + $0xf0] sm:$0xff]
        %v548 = vld [vmem:[#allocation5 + $0xf8] sm:$0xff]
        %v550 = vunpack.c.l.b16 %v516
        %v551 = vunpack.c.h.b16 %v516
        %v552 = vpack.c.b16 %v550, %v550
        %v553 = vpack.c.b16 %v551, %v551
        %v588 = vunpack.c.l.b16 %v517
        %v589 = vunpack.c.h.b16 %v517
        %v590 = vunpack.c.l.b16 %v518
        %v591 = vunpack.c.h.b16 %v518
        %v592 = vunpack.c.l.b16 %v519
        %v593 = vunpack.c.h.b16 %v519
        %v594 = vunpack.c.l.b16 %v520
        %v595 = vunpack.c.h.b16 %v520
        %v596 = vunpack.c.l.b16 %v521
        %v597 = vunpack.c.h.b16 %v521
        %v598 = vunpack.c.l.b16 %v522
        %v599 = vunpack.c.h.b16 %v522
        %v600 = vunpack.c.l.b16 %v523
        %v601 = vunpack.c.h.b16 %v523
        %v602 = vunpack.c.l.b16 %v524
        %v603 = vunpack.c.h.b16 %v524
        %v604 = vunpack.c.l.b16 %v525
        %v605 = vunpack.c.h.b16 %v525
        %v606 = vunpack.c.l.b16 %v526
        %v607 = vunpack.c.h.b16 %v526
        %v608 = vunpack.c.l.b16 %v527
        %v609 = vunpack.c.h.b16 %v527
        %v610 = vunpack.c.l.b16 %v528
        %v611 = vunpack.c.h.b16 %v528
        %v612 = vunpack.c.l.b16 %v529
        %v613 = vunpack.c.h.b16 %v529
        %v614 = vunpack.c.l.b16 %v530
        %v615 = vunpack.c.h.b16 %v530
        %v616 = vunpack.c.l.b16 %v531
        %v617 = vunpack.c.h.b16 %v531
        %v618 = vunpack.c.l.b16 %v532
        %v619 = vunpack.c.h.b16 %v532
        %v620 = vunpack.c.l.b16 %v533
        %v621 = vunpack.c.h.b16 %v533
        %v622 = vunpack.c.l.b16 %v534
        %v623 = vunpack.c.h.b16 %v534
        %v624 = vunpack.c.l.b16 %v535
        %v625 = vunpack.c.h.b16 %v535
        %v626 = vunpack.c.l.b16 %v536
        %v627 = vunpack.c.h.b16 %v536
        %v628 = vunpack.c.l.b16 %v537
        %v629 = vunpack.c.h.b16 %v537
        %v630 = vunpack.c.l.b16 %v538
        %v631 = vunpack.c.h.b16 %v538
        %v632 = vunpack.c.l.b16 %v539
        %v633 = vunpack.c.h.b16 %v539
        %v634 = vunpack.c.l.b16 %v540
        %v635 = vunpack.c.h.b16 %v540
        %v636 = vunpack.c.l.b16 %v541
        %v637 = vunpack.c.h.b16 %v541
        %v638 = vunpack.c.l.b16 %v542
        %v639 = vunpack.c.h.b16 %v542
        %v640 = vunpack.c.l.b16 %v543
        %v641 = vunpack.c.h.b16 %v543
        %v642 = vunpack.c.l.b16 %v544
        %v643 = vunpack.c.h.b16 %v544
        %v644 = vunpack.c.l.b16 %v545
        %v645 = vunpack.c.h.b16 %v545
        %v646 = vunpack.c.l.b16 %v546
        %v647 = vunpack.c.h.b16 %v546
        %v648 = vunpack.c.l.b16 %v547
        %v649 = vunpack.c.h.b16 %v547
        %v650 = vunpack.c.l.b16 %v548
        %v651 = vunpack.c.h.b16 %v548
        %v652 = vpack.c.b16 %v590, %v588
        %v653 = vpack.c.b16 %v591, %v589
        %v654 = vpack.c.b16 %v594, %v592
        %v655 = vpack.c.b16 %v595, %v593
        %v656 = vpack.c.b16 %v598, %v596
        %v657 = vpack.c.b16 %v599, %v597
        %v658 = vpack.c.b16 %v602, %v600
        %v659 = vpack.c.b16 %v603, %v601
        %v660 = vpack.c.b16 %v606, %v604
        %v661 = vpack.c.b16 %v607, %v605
        %v662 = vpack.c.b16 %v610, %v608
        %v663 = vpack.c.b16 %v611, %v609
        %v664 = vpack.c.b16 %v614, %v612
        %v665 = vpack.c.b16 %v615, %v613
        %v666 = vpack.c.b16 %v618, %v616
        %v667 = vpack.c.b16 %v619, %v617
        %v668 = vpack.c.b16 %v622, %v620
        %v669 = vpack.c.b16 %v623, %v621
        %v670 = vpack.c.b16 %v626, %v624
        %v671 = vpack.c.b16 %v627, %v625
        %v672 = vpack.c.b16 %v630, %v628
        %v673 = vpack.c.b16 %v631, %v629
        %v674 = vpack.c.b16 %v634, %v632
        %v675 = vpack.c.b16 %v635, %v633
        %v676 = vpack.c.b16 %v638, %v636
        %v677 = vpack.c.b16 %v639, %v637
        %v678 = vpack.c.b16 %v642, %v640
        %v679 = vpack.c.b16 %v643, %v641
        %v680 = vpack.c.b16 %v646, %v644
        %v681 = vpack.c.b16 %v647, %v645
        %v682 = vpack.c.b16 %v650, %v648
        %v683 = vpack.c.b16 %v651, %v649
        %716 = vmatprep.subr.bf16.mxu0 %v653
        %717 = vmatpush1.bf16.msra.mxu0 %v652
        %718 = vmatprep.subr.bf16.mxu0 %v655
        %719 = vmatpush1.bf16.msra.mxu0 %v654
        %720 = vmatprep.subr.bf16.mxu0 %v657
        %721 = vmatpush1.bf16.msra.mxu0 %v656
        %722 = vmatprep.subr.bf16.mxu0 %v659
        %723 = vmatpush1.bf16.msra.mxu0 %v658
        %724 = vmatprep.subr.bf16.mxu0 %v661
        %725 = vmatpush1.bf16.msra.mxu0 %v660
        %726 = vmatprep.subr.bf16.mxu0 %v663
        %727 = vmatpush1.bf16.msra.mxu0 %v662
        %728 = vmatprep.subr.bf16.mxu0 %v665
        %729 = vmatpush1.bf16.msra.mxu0 %v664
        %730 = vmatprep.subr.bf16.mxu0 %v667
        %731 = vmatpush1.bf16.msra.mxu0 %v666
        %732 = vmatprep.subr.bf16.mxu0 %v669
        %733 = vmatpush1.bf16.msra.mxu0 %v668
        %734 = vmatprep.subr.bf16.mxu0 %v671
        %735 = vmatpush1.bf16.msra.mxu0 %v670
        %736 = vmatprep.subr.bf16.mxu0 %v673
        %737 = vmatpush1.bf16.msra.mxu0 %v672
        %738 = vmatprep.subr.bf16.mxu0 %v675
        %739 = vmatpush1.bf16.msra.mxu0 %v674
        %740 = vmatprep.subr.bf16.mxu0 %v677
        %741 = vmatpush1.bf16.msra.mxu0 %v676
        %742 = vmatprep.subr.bf16.mxu0 %v679
        %743 = vmatpush1.bf16.msra.mxu0 %v678
        %744 = vmatprep.subr.bf16.mxu0 %v681
        %745 = vmatpush1.bf16.msra.mxu0 %v680
        %746 = vmatprep.subr.bf16.mxu0 %v683
        %747 = vmatpush1.bf16.msra.mxu0 %v682
        %748 = vmatprep.mubr.bf16.mxu0 %v553
        %749 = vmatmul.mubr.bf16.gmra.mrb[0].mxu0 %v552
        %v750 = vpop.f32.mrb[0].mxu0
        %v751 = vadd.f32 0.0, %v750
        %v752 = vpop.f32.mrb[0].mxu0
        %v753 = vadd.f32 0.0, %v752
        %v754 = vpop.f32.mrb[0].mxu0
        %v755 = vpop.f32.mrb[0].mxu0
        %756 = vdwg.mxu0
        %v757 = vld [vmem:[#allocation7] sm:$0xf]
        %v758 = vld [vmem:[#allocation7 + $0x4] sm:$0xf]
        %v759 = vld [vmem:[#allocation7 + $0x8] sm:$0xf]
        %v760 = vld [vmem:[#allocation7 + $0xc] sm:$0xf]
        %v761 = vld [vmem:[#allocation7 + $0x10] sm:$0xf]
        %v762 = vld [vmem:[#allocation7 + $0x14] sm:$0xf]
        %v763 = vld [vmem:[#allocation7 + $0x18] sm:$0xf]
        %v764 = vld [vmem:[#allocation7 + $0x1c] sm:$0xf]
        %v765 = vld [vmem:[#allocation7 + $0x20] sm:$0xf]
        %v766 = vld [vmem:[#allocation7 + $0x24] sm:$0xf]
        %v767 = vld [vmem:[#allocation7 + $0x28] sm:$0xf]
        %v768 = vld [vmem:[#allocation7 + $0x2c] sm:$0xf]
        %v769 = vld [vmem:[#allocation7 + $0x30] sm:$0xf]
        %v770 = vld [vmem:[#allocation7 + $0x34] sm:$0xf]
        %v771 = vld [vmem:[#allocation7 + $0x38] sm:$0xf]
        %v772 = vld [vmem:[#allocation7 + $0x3c] sm:$0xf]
        %v773 = vld [vmem:[#allocation7 + $0x40] sm:$0xf]
        %v774 = vld [vmem:[#allocation7 + $0x44] sm:$0xf]
        %v775 = vld [vmem:[#allocation7 + $0x48] sm:$0xf]
        %v776 = vld [vmem:[#allocation7 + $0x4c] sm:$0xf]
        %v777 = vld [vmem:[#allocation7 + $0x50] sm:$0xf]
        %v778 = vld [vmem:[#allocation7 + $0x54] sm:$0xf]
        %v779 = vld [vmem:[#allocation7 + $0x58] sm:$0xf]
        %v780 = vld [vmem:[#allocation7 + $0x5c] sm:$0xf]
        %v781 = vld [vmem:[#allocation7 + $0x60] sm:$0xf]
        %v782 = vld [vmem:[#allocation7 + $0x64] sm:$0xf]
        %v783 = vld [vmem:[#allocation7 + $0x68] sm:$0xf]
        %v784 = vld [vmem:[#allocation7 + $0x6c] sm:$0xf]
        %v785 = vld [vmem:[#allocation7 + $0x70] sm:$0xf]
        %v786 = vld [vmem:[#allocation7 + $0x74] sm:$0xf]
        %v787 = vld [vmem:[#allocation7 + $0x78] sm:$0xf]
        %v788 = vld [vmem:[#allocation7 + $0x7c] sm:$0xf]
        %v821 = vunpack.c.l.b16 %v757
        %v822 = vunpack.c.l.b16 %v758
        %v823 = vunpack.c.l.b16 %v759
        %v824 = vunpack.c.l.b16 %v760
        %v825 = vunpack.c.l.b16 %v761
        %v826 = vunpack.c.l.b16 %v762
        %v827 = vunpack.c.l.b16 %v763
        %v828 = vunpack.c.l.b16 %v764
        %v829 = vunpack.c.l.b16 %v765
        %v830 = vunpack.c.l.b16 %v766
        %v831 = vunpack.c.l.b16 %v767
        %v832 = vunpack.c.l.b16 %v768
        %v833 = vunpack.c.l.b16 %v769
        %v834 = vunpack.c.l.b16 %v770
        %v835 = vunpack.c.l.b16 %v771
        %v836 = vunpack.c.l.b16 %v772
        %v837 = vunpack.c.l.b16 %v773
        %v838 = vunpack.c.l.b16 %v774
        %v839 = vunpack.c.l.b16 %v775
        %v840 = vunpack.c.l.b16 %v776
        %v841 = vunpack.c.l.b16 %v777
        %v842 = vunpack.c.l.b16 %v778
        %v843 = vunpack.c.l.b16 %v779
        %v844 = vunpack.c.l.b16 %v780
        %v845 = vunpack.c.l.b16 %v781
        %v846 = vunpack.c.l.b16 %v782
        %v847 = vunpack.c.l.b16 %v783
        %v848 = vunpack.c.l.b16 %v784
        %v849 = vunpack.c.l.b16 %v785
        %v850 = vunpack.c.l.b16 %v786
        %v851 = vunpack.c.l.b16 %v787
        %v852 = vunpack.c.l.b16 %v788
        %v853 = vpack.c.b16 %v822, %v821
        %v854 = vpack.c.b16 %v824, %v823
        %v855 = vpack.c.b16 %v826, %v825
        %v856 = vpack.c.b16 %v828, %v827
        %v857 = vpack.c.b16 %v830, %v829
        %v858 = vpack.c.b16 %v832, %v831
        %v859 = vpack.c.b16 %v834, %v833
        %v860 = vpack.c.b16 %v836, %v835
        %v861 = vpack.c.b16 %v838, %v837
        %v862 = vpack.c.b16 %v840, %v839
        %v863 = vpack.c.b16 %v842, %v841
        %v864 = vpack.c.b16 %v844, %v843
        %v865 = vpack.c.b16 %v846, %v845
        %v866 = vpack.c.b16 %v848, %v847
        %v867 = vpack.c.b16 %v850, %v849
        %v868 = vpack.c.b16 %v852, %v851
        %885 = vmatprep.subr.bf16.mxu0 0
        %886 = vmatpush1.bf16.msra.mxu0 %v853
        %887 = vmatprep.subr.bf16.mxu0 0
        %888 = vmatpush1.bf16.msra.mxu0 %v854
        %889 = vmatprep.subr.bf16.mxu0 0
        %890 = vmatpush1.bf16.msra.mxu0 %v855
        %891 = vmatprep.subr.bf16.mxu0 0
        %892 = vmatpush1.bf16.msra.mxu0 %v856
        %893 = vmatprep.subr.bf16.mxu0 0
        %894 = vmatpush1.bf16.msra.mxu0 %v857
        %895 = vmatprep.subr.bf16.mxu0 0
        %896 = vmatpush1.bf16.msra.mxu0 %v858
        %897 = vmatprep.subr.bf16.mxu0 0
        %898 = vmatpush1.bf16.msra.mxu0 %v859
        %899 = vmatprep.subr.bf16.mxu0 0
        %900 = vmatpush1.bf16.msra.mxu0 %v860
        %901 = vmatprep.subr.bf16.mxu0 0
        %902 = vmatpush1.bf16.msra.mxu0 %v861
        %903 = vmatprep.subr.bf16.mxu0 0
        %904 = vmatpush1.bf16.msra.mxu0 %v862
        %905 = vmatprep.subr.bf16.mxu0 0
        %906 = vmatpush1.bf16.msra.mxu0 %v863
        %907 = vmatprep.subr.bf16.mxu0 0
        %908 = vmatpush1.bf16.msra.mxu0 %v864
        %909 = vmatprep.subr.bf16.mxu0 0
        %910 = vmatpush1.bf16.msra.mxu0 %v865
        %911 = vmatprep.subr.bf16.mxu0 0
        %912 = vmatpush1.bf16.msra.mxu0 %v866
        %913 = vmatprep.subr.bf16.mxu0 0
        %914 = vmatpush1.bf16.msra.mxu0 %v867
        %915 = vmatprep.subr.bf16.mxu0 0
        %916 = vmatpush1.bf16.msra.mxu0 %v868
        %917 = vmatprep.mubr.bf16.mxu0 %v553
        %918 = vmatmul.mubr.bf16.gmra.mrb[0].mxu0 %v552
        %v919 = vpop.f32.mrb[0].mxu0
        %v920 = vadd.f32 0.0, %v919
        %v921 = vpop.f32.mrb[0].mxu0
        %v922 = vpop.f32.mrb[0].mxu0
        %v923 = vpop.f32.mrb[0].mxu0
        %924 = vdwg.mxu0
        %v925 = vld [vmem:[#allocation8] sm:$0xf]
        %v926 = vld [vmem:[#allocation8 + $0x4] sm:$0xf]
        %v927 = vld [vmem:[#allocation8 + $0x8] sm:$0xf]
        %v928 = vld [vmem:[#allocation8 + $0xc] sm:$0xf]
        %v929 = vld [vmem:[#allocation8 + $0x10] sm:$0xf]
        %v930 = vld [vmem:[#allocation8 + $0x14] sm:$0xf]
        %v931 = vld [vmem:[#allocation8 + $0x18] sm:$0xf]
        %v932 = vld [vmem:[#allocation8 + $0x1c] sm:$0xf]
        %v933 = vld [vmem:[#allocation8 + $0x20] sm:$0xf]
        %v934 = vld [vmem:[#allocation8 + $0x24] sm:$0xf]
        %v935 = vld [vmem:[#allocation8 + $0x28] sm:$0xf]
        %v936 = vld [vmem:[#allocation8 + $0x2c] sm:$0xf]
        %v937 = vld [vmem:[#allocation8 + $0x30] sm:$0xf]
        %v938 = vld [vmem:[#allocation8 + $0x34] sm:$0xf]
        %v939 = vld [vmem:[#allocation8 + $0x38] sm:$0xf]
        %v940 = vld [vmem:[#allocation8 + $0x3c] sm:$0xf]
        %v941 = vld [vmem:[#allocation8 + $0x40] sm:$0xf]
        %v942 = vld [vmem:[#allocation8 + $0x44] sm:$0xf]
        %v943 = vld [vmem:[#allocation8 + $0x48] sm:$0xf]
        %v944 = vld [vmem:[#allocation8 + $0x4c] sm:$0xf]
        %v945 = vld [vmem:[#allocation8 + $0x50] sm:$0xf]
        %v946 = vld [vmem:[#allocation8 + $0x54] sm:$0xf]
        %v947 = vld [vmem:[#allocation8 + $0x58] sm:$0xf]
        %v948 = vld [vmem:[#allocation8 + $0x5c] sm:$0xf]
        %v949 = vld [vmem:[#allocation8 + $0x60] sm:$0xf]
        %v950 = vld [vmem:[#allocation8 + $0x64] sm:$0xf]
        %v951 = vld [vmem:[#allocation8 + $0x68] sm:$0xf]
        %v952 = vld [vmem:[#allocation8 + $0x6c] sm:$0xf]
        %v953 = vld [vmem:[#allocation8 + $0x70] sm:$0xf]
        %v954 = vld [vmem:[#allocation8 + $0x74] sm:$0xf]
        %v955 = vld [vmem:[#allocation8 + $0x78] sm:$0xf]
        %v956 = vld [vmem:[#allocation8 + $0x7c] sm:$0xf]
        %v989 = vunpack.c.l.b16 %v925
        %v990 = vunpack.c.l.b16 %v926
        %v991 = vunpack.c.l.b16 %v927
        %v992 = vunpack.c.l.b16 %v928
        %v993 = vunpack.c.l.b16 %v929
        %v994 = vunpack.c.l.b16 %v930
        %v995 = vunpack.c.l.b16 %v931
        %v996 = vunpack.c.l.b16 %v932
        %v997 = vunpack.c.l.b16 %v933
        %v998 = vunpack.c.l.b16 %v934
        %v999 = vunpack.c.l.b16 %v935
        %v1000 = vunpack.c.l.b16 %v936
        %v1001 = vunpack.c.l.b16 %v937
        %v1002 = vunpack.c.l.b16 %v938
        %v1003 = vunpack.c.l.b16 %v939
        %v1004 = vunpack.c.l.b16 %v940
        %v1005 = vunpack.c.l.b16 %v941
        %v1006 = vunpack.c.l.b16 %v942
        %v1007 = vunpack.c.l.b16 %v943
        %v1008 = vunpack.c.l.b16 %v944
        %v1009 = vunpack.c.l.b16 %v945
        %v1010 = vunpack.c.l.b16 %v946
        %v1011 = vunpack.c.l.b16 %v947
        %v1012 = vunpack.c.l.b16 %v948
        %v1013 = vunpack.c.l.b16 %v949
        %v1014 = vunpack.c.l.b16 %v950
        %v1015 = vunpack.c.l.b16 %v951
        %v1016 = vunpack.c.l.b16 %v952
        %v1017 = vunpack.c.l.b16 %v953
        %v1018 = vunpack.c.l.b16 %v954
        %v1019 = vunpack.c.l.b16 %v955
        %v1020 = vunpack.c.l.b16 %v956
        %v1021 = vpack.c.b16 %v990, %v989
        %v1022 = vpack.c.b16 %v992, %v991
        %v1023 = vpack.c.b16 %v994, %v993
        %v1024 = vpack.c.b16 %v996, %v995
        %v1025 = vpack.c.b16 %v998, %v997
        %v1026 = vpack.c.b16 %v1000, %v999
        %v1027 = vpack.c.b16 %v1002, %v1001
        %v1028 = vpack.c.b16 %v1004, %v1003
        %v1029 = vpack.c.b16 %v1006, %v1005
        %v1030 = vpack.c.b16 %v1008, %v1007
        %v1031 = vpack.c.b16 %v1010, %v1009
        %v1032 = vpack.c.b16 %v1012, %v1011
        %v1033 = vpack.c.b16 %v1014, %v1013
        %v1034 = vpack.c.b16 %v1016, %v1015
        %v1035 = vpack.c.b16 %v1018, %v1017
        %v1036 = vpack.c.b16 %v1020, %v1019
        %1053 = vmatprep.subr.bf16.mxu0 0
        %1054 = vmatpush1.bf16.msra.mxu0 %v1021
        %1055 = vmatprep.subr.bf16.mxu0 0
        %1056 = vmatpush1.bf16.msra.mxu0 %v1022
        %1057 = vmatprep.subr.bf16.mxu0 0
        %1058 = vmatpush1.bf16.msra.mxu0 %v1023
        %1059 = vmatprep.subr.bf16.mxu0 0
        %1060 = vmatpush1.bf16.msra.mxu0 %v1024
        %1061 = vmatprep.subr.bf16.mxu0 0
        %1062 = vmatpush1.bf16.msra.mxu0 %v1025
        %1063 = vmatprep.subr.bf16.mxu0 0
        %1064 = vmatpush1.bf16.msra.mxu0 %v1026
        %1065 = vmatprep.subr.bf16.mxu0 0
        %1066 = vmatpush1.bf16.msra.mxu0 %v1027
        %1067 = vmatprep.subr.bf16.mxu0 0
        %1068 = vmatpush1.bf16.msra.mxu0 %v1028
        %1069 = vmatprep.subr.bf16.mxu0 0
        %1070 = vmatpush1.bf16.msra.mxu0 %v1029
        %1071 = vmatprep.subr.bf16.mxu0 0
        %1072 = vmatpush1.bf16.msra.mxu0 %v1030
        %1073 = vmatprep.subr.bf16.mxu0 0
        %1074 = vmatpush1.bf16.msra.mxu0 %v1031
        %1075 = vmatprep.subr.bf16.mxu0 0
        %1076 = vmatpush1.bf16.msra.mxu0 %v1032
        %1077 = vmatprep.subr.bf16.mxu0 0
        %1078 = vmatpush1.bf16.msra.mxu0 %v1033
        %1079 = vmatprep.subr.bf16.mxu0 0
        %1080 = vmatpush1.bf16.msra.mxu0 %v1034
        %1081 = vmatprep.subr.bf16.mxu0 0
        %1082 = vmatpush1.bf16.msra.mxu0 %v1035
        %1083 = vmatprep.subr.bf16.mxu0 0
        %1084 = vmatpush1.bf16.msra.mxu0 %v1036
        %1085 = vmatprep.mubr.bf16.mxu0 %v553
        %1086 = vmatmul.mubr.bf16.gmra.mrb[0].mxu0 %v552
        %v1087 = vpop.f32.mrb[0].mxu0
        %v1088 = vadd.f32 0.0, %v1087
        %v1089 = vpop.f32.mrb[0].mxu0
        %v1090 = vpop.f32.mrb[0].mxu0
        %v1091 = vpop.f32.mrb[0].mxu0
        %1092 = vdwg.mxu0
        %v1093 = vld [vmem:[%s510] sm:$0xff]
        %v1094 = vld [vmem:[%s443] sm:$0xff]
        %v1095 = vld [vmem:[%s514] sm:$0xff]
        %v1096 = vmul.f32 %v751, %v1093
        %1097 = vrot.lane.b32.xlu0 %v751, 64
        %v1098 = vpop.permute.xlu0 %1097
        %v1099 = vmul.f32 %v1098, %v1094
        %v1100 = vadd.f32 %v1096, %v1099
        %1102 = vset.pattern.permute.xlu0 0
        %1103 = vperm.xlu0 %1102, %v1095
        %v1104 = vpop.permute.xlu0 %1103
        %v1106 = vmul.f32 %v1100, %v1104
        %v1107 = vpack.c.bf16 %v1106, %v1106
        %1108 = vst [vmem:[%s489] sm:$0xf] %v1107
        %v1109 = vmul.f32 %v753, %v1093
        %1110 = vrot.lane.b32.xlu0 %v753, 64
        %v1111 = vpop.permute.xlu0 %1110
        %v1112 = vmul.f32 %v1111, %v1094
        %v1113 = vadd.f32 %v1109, %v1112
        %v1114 = vmul.f32 %v1113, %v1104
        %v1115 = vpack.c.bf16 %v1114, %v1114
        %1116 = vst [vmem:[%s489 + $0x4] sm:$0xf] %v1115
        %v1117 = vmul.f32 %v920, %v1093
        %1118 = vrot.lane.b32.xlu0 %v920, 64
        %v1119 = vpop.permute.xlu0 %1118
        %v1120 = vmul.f32 %v1119, %v1094
        %v1121 = vadd.f32 %v1117, %v1120
        %v1122 = vpack.c.bf16 %v1121, %v1121
        %1123 = vst [vmem:[%s496] sm:$0xf] %v1122
        %v1124 = vpack.c.bf16 %v1088, %v1088
        %1125 = vst [vmem:[%s503] sm:$0xf] %v1124
        %s1126 = sand.u32 %s227, 1
        %s1127 = scalar_lea.sflag [#allocation4], %s1126
        %s1128 = sand.u32 %s227, 1
        %s1129 = smul.addr %s1128, 8
        %s1130 = scalar_lea.vmem [#allocation11], %s1129
        %s1131 = sand.u32 %s32, 1
        %s1132 = scalar_lea.sflag [#allocation13], %s1131
        %s1133 = sand.u32 %s255, 1
        %s1134 = smul.addr %s1133, 4
        %s1135 = scalar_lea.vmem [#allocation12], %s1134
        %s1136 = sand.u32 %s32, 1
        %s1137 = scalar_lea.sflag [#allocation13], %s1136
        %s1138 = sand.u32 %s283, 1
        %s1139 = smul.addr %s1138, 4
        %s1140 = scalar_lea.vmem [#allocation14], %s1139
        // Predicated region
        $region69: #{tpu_custom_call.1} parent=47 // pred_check
          %p1141 = pneg %p237
        $region70: #{tpu_custom_call.1} parent=47 // pred_check_branch
          %1143 = sbr.rel (%p1141) target = $region72
        $region71: #{tpu_custom_call.1} parent=47 // pred_region
          %s1145 = ssub.s32 128, 128
          %1146 = vsyncadd %s1127, %s1145
          %s1147 = smul.addr %s37, 2
          %s1148 = smul.addr %s36, 2
          %s1149 = sadd.s32 %s1147, %s1148
          %s1150 = smul.addr %s1149, 64
          %s1151 = scalar_lea.hbm %s7, %s1150
          %s1153 = sshll.u32 %s1130, 4
          %s1154 = int_to_ptr.vmem [resolvable:$true] %s1153
          %1156 = dma.vmem_to_hbm [thread:$0]  %s1154, 128, %s1151, %s1127
        $region72: #{tpu_custom_call.1} parent=47 // pred_fallthru
          _
        // Predicated region
        $region73: #{tpu_custom_call.1} parent=47 // pred_check
          %p1157 = pneg %p265
        $region74: #{tpu_custom_call.1} parent=47 // pred_check_branch
          %1159 = sbr.rel (%p1157) target = $region76
        $region75: #{tpu_custom_call.1} parent=47 // pred_region
          %s1161 = ssub.s32 64, 64
          %1162 = vsyncadd %s1132, %s1161
          %s1163 = sadd.s32 %s37, %s36
          %s1164 = smul.addr %s1163, 64
          %s1165 = scalar_lea.hbm %s8, %s1164
          %s1167 = sshll.u32 %s1135, 4
          %s1168 = int_to_ptr.vmem [resolvable:$true] %s1167
          %1170 = dma.vmem_to_hbm [thread:$0]  %s1168, 64, %s1165, %s1132
        $region76: #{tpu_custom_call.1} parent=47 // pred_fallthru
          _
        // Predicated region
        $region77: #{tpu_custom_call.1} parent=47 // pred_check
          %p1171 = pneg %p293
        $region78: #{tpu_custom_call.1} parent=47 // pred_check_branch
          %1173 = sbr.rel (%p1171) target = $region80
        $region79: #{tpu_custom_call.1} parent=47 // pred_region
          %s1175 = ssub.s32 64, 64
          %1176 = vsyncadd %s1137, %s1175
          %s1177 = sadd.s32 %s37, %s36
          %s1178 = smul.addr %s1177, 64
          %s1179 = scalar_lea.hbm %s9, %s1178
          %s1181 = sshll.u32 %s1140, 4
          %s1182 = int_to_ptr.vmem [resolvable:$true] %s1181
          %1184 = dma.vmem_to_hbm [thread:$0]  %s1182, 64, %s1179, %s1137
        $region80: #{tpu_custom_call.1} parent=47 // pred_fallthru
          _
      $region48: #{tpu_custom_call.1} parent=5 // pred_fallthru
        _
      %p1185 = scmp.le.s32.totalorder 2, %s27
      // Predicated region
      $region81: #{tpu_custom_call.1} parent=5 // pred_check
        %p1186 = pneg %p1185
      $region82: #{tpu_custom_call.1} parent=5 // pred_check_branch
        %1188 = sbr.rel (%p1186) target = $region84
      $region83: #{tpu_custom_call.1} parent=5 // pred_region
        %s1189 = ssub.s32 %s27, 2
        // Predicated region
        $region85: #{tpu_custom_call.1} parent=83 // pred_check
          %p1190 = pneg %p243
        $region86: #{tpu_custom_call.1} parent=83 // pred_check_branch
          %1192 = sbr.rel (%p1190) target = $region88
        $region87: #{tpu_custom_call.1} parent=83 // pred_region
          %s1193 = sand.u32 %s228, 1
          %s1194 = scalar_lea.sflag [#allocation4], %s1193
          %s1195 = sand.u32 %s228, 1
          %s1196 = smul.addr %s1195, 8
          %s1197 = scalar_lea.vmem [#allocation11], %s1196
          %1198 = dma.done %s1194, 128
        $region88: #{tpu_custom_call.1} parent=83 // pred_fallthru
          _
        // Predicated region
        $region89: #{tpu_custom_call.1} parent=83 // pred_check
          %p1199 = pneg %p271
        $region90: #{tpu_custom_call.1} parent=83 // pred_check_branch
          %1201 = sbr.rel (%p1199) target = $region92
        $region91: #{tpu_custom_call.1} parent=83 // pred_region
          %s1202 = sand.u32 %s33, 1
          %s1203 = scalar_lea.sflag [#allocation13], %s1202
          %s1204 = sand.u32 %s256, 1
          %s1205 = smul.addr %s1204, 4
          %s1206 = scalar_lea.vmem [#allocation12], %s1205
          %1207 = dma.done %s1203, 64
        $region92: #{tpu_custom_call.1} parent=83 // pred_fallthru
          _
        // Predicated region
        $region93: #{tpu_custom_call.1} parent=83 // pred_check
          %p1208 = pneg %p299
        $region94: #{tpu_custom_call.1} parent=83 // pred_check_branch
          %1210 = sbr.rel (%p1208) target = $region96
        $region95: #{tpu_custom_call.1} parent=83 // pred_region
          %s1211 = sand.u32 %s33, 1
          %s1212 = scalar_lea.sflag [#allocation13], %s1211
          %s1213 = sand.u32 %s284, 1
          %s1214 = smul.addr %s1213, 4
          %s1215 = scalar_lea.vmem [#allocation14], %s1214
          %1216 = dma.done %s1212, 64
        $region96: #{tpu_custom_call.1} parent=83 // pred_fallthru
          _
      $region84: #{tpu_custom_call.1} parent=5 // pred_fallthru
        _
    $region6: #{tpu_custom_call.1} parent=1 // loop_footer
      %s31 = sadd.s32 1, %s27
    $region7: #{tpu_custom_call.1} parent=1 // loop_footer_branch
      %26 = sbr.rel target = $region3
    $region8: #{tpu_custom_call.1} parent=1 // loop_exit
      _
    %1217 = vsyncpa [#allocation3], 1
    %s1218 = scalar_lea.sflag [#allocation3], 1
    %1219 = vsyncpa %s1218, 1
    %1220 = vsyncpa [#allocation6], 1
    %1221 = vsyncpa [#allocation9], 1
    %1222 = vsyncpa [#allocation4], 1
    %s1223 = scalar_lea.sflag [#allocation4], 1
    %1224 = vsyncpa %s1223, 1
    %1225 = vsyncpa [#allocation13], 1
    %s1226 = scalar_lea.sflag [#allocation13], 1
    %1227 = vsyncpa %s1226, 1

</llo_original>
